<compile_context>
chip_gen: v6e
topology: v6e:2x2x1
jax: 0.10.0
libtpu: 0.0.40
codegen_flags: <defaults>
</compile_context>

<pallas_src>
import functools

import jax
import jax.numpy as jnp
from jax.experimental import pallas as pl
from jax.experimental.pallas import tpu as pltpu


def _round_up(x, m):
    return ((x + m - 1) // m) * m


def _bce_dice_stats_kernel(
    x_ref, t_ref,                                  # inputs  (TM, TN)
    out_ref,                                       # output  (TM, 512) packed stats
    bce_acc, inter_acc, psum_acc, tsum_acc,        # scratch (TM, 128) f32
    *, cols, need_col_mask):
    k = pl.program_id(1)
    num_k = pl.num_programs(1)

    @pl.when(k == 0)
    def _init():
        bce_acc[...] = jnp.zeros_like(bce_acc)
        inter_acc[...] = jnp.zeros_like(inter_acc)
        psum_acc[...] = jnp.zeros_like(psum_acc)
        tsum_acc[...] = jnp.zeros_like(tsum_acc)

    x = x_ref[...].astype(jnp.float32)
    t = t_ref[...].astype(jnp.float32)

    # Stable BCE-with-logits; exp(-|x|) shared with sigmoid.
    e = jnp.exp(-jnp.abs(x))
    bce = jnp.maximum(x, 0.0) - x * t + jnp.log1p(e)
    p = jnp.where(x >= 0.0, 1.0, e) / (1.0 + e)

    def _fold_lanes(v):
        # (TM, TN) -> (TM, 128) via static lane-slice VPU adds (no XLU reduce).
        nsl = v.shape[1] // 128
        acc = v[:, 0:128]
        for j in range(1, nsl):
            acc = acc + v[:, j * 128:(j + 1) * 128]
        return acc

    def _accumulate(bce_v, p_v, t_v):
        bce_acc[...] += _fold_lanes(bce_v)
        inter_acc[...] += _fold_lanes(p_v * t_v)
        psum_acc[...] += _fold_lanes(p_v)
        tsum_acc[...] += _fold_lanes(t_v)

    if need_col_mask:
        tn = x.shape[1]

        # Only the last HW tile has out-of-bounds columns; every other step is
        # mask-free.
        @pl.when(k < num_k - 1)
        def _unmasked():
            _accumulate(bce, p, t)

        @pl.when(k == num_k - 1)
        def _masked():
            col = jax.lax.broadcasted_iota(jnp.int32, (1, tn), 1) + k * tn
            valid = col < cols
            # Mask x-derived terms AND t: out-of-bounds block contents are not
            # guaranteed to be zero.
            _accumulate(jnp.where(valid, bce, 0.0),
                        jnp.where(valid, p, 0.0),
                        jnp.where(valid, t, 0.0))
    else:
        _accumulate(bce, p, t)

    @pl.when(k == num_k - 1)
    def _finalize():
        # Single lane-dense packed output: [bce | inter | p_sum | t_sum] x 128 lanes.
        out_ref[:, 0:128] = bce_acc[...]
        out_ref[:, 128:256] = inter_acc[...]
        out_ref[:, 256:384] = psum_acc[...]
        out_ref[:, 384:512] = tsum_acc[...]


def bce_plus_dice_loss(inputs, targets, bce_weight=0.5, dice_weight=0.5, smooth=1.0):
    """inputs: (N, C, H, W) logits; targets: (N, C, H, W) (f32/bf16 binary masks).

    Returns scalar f32 = bce_weight * BCEWithLogits + dice_weight * DiceLoss(sigmoid(x)).
    """
    N, C, H, W = inputs.shape
    NC, HW = N * C, H * W

    # Fold HW into rows so tiles are tall (sublane-full) and, on v7x, the
    # parallel NC axis has >= 2 blocks.  G is a power of two dividing HW; the
    # per-(n, c) sums are recovered by summing the G sub-row partials below.
    G = 1
    while (NC * G < 512) and (HW % (2 * G) == 0) and (HW // (2 * G) >= 128):
        G *= 2
    rows, cols = NC * G, HW // G

    x2 = inputs.reshape(rows, cols)
    t2 = targets.reshape(rows, cols)   # bf16/int8 targets accepted as-is (narrower HBM stream)

    # Universal-safe tiles: ~2 MiB/input block, ~9.5 MiB double-buffered footprint
    # (fits default scoped VMEM on v5e/v6e/v7x).  TM is a multiple of 32 so bf16 /
    # int8 inputs also satisfy their sublane tiling.
    TM = min(256, _round_up(rows, 32))
    TN = min(2048, _round_up(cols, 128))
    # v7x megacore: ensure >= 2 blocks on the 'parallel' NC axis when rows are tall
    # enough that halving TM keeps blocks reasonably large.
    if rows >= 128 and pl.cdiv(rows, TM) == 1:
        TM = _round_up(pl.cdiv(rows, 2), 32)

    grid = (pl.cdiv(rows, TM), pl.cdiv(cols, TN))
    need_col_mask = (cols % TN) != 0

    kernel = functools.partial(
        _bce_dice_stats_kernel, cols=cols, need_col_mask=need_col_mask)

    stats = pl.pallas_call(
        kernel,
        out_shape=jax.ShapeDtypeStruct((rows, 512), jnp.float32),
        grid_spec=pltpu.PrefetchScalarGridSpec(
            num_scalar_prefetch=0,
            grid=grid,
            in_specs=[
                pl.BlockSpec((TM, TN), lambda i, k: (i, k)),
                pl.BlockSpec((TM, TN), lambda i, k: (i, k)),
            ],
            out_specs=pl.BlockSpec((TM, 512), lambda i, k: (i, 0)),
            scratch_shapes=[pltpu.VMEM((TM, 128), jnp.float32) for _ in range(4)],
        ),
        compiler_params=pltpu.CompilerParams(
            dimension_semantics=("parallel", "arbitrary")),
    )(x2, t2)

    # Tiny O(NC) final reduction in plain JAX: sum the G sub-rows and 128 lanes
    # per statistic, then combine.
    per_nc = stats.reshape(NC, G, 4, 128).sum(axis=(1, 3))   # (NC, 4)
    bce_sum = per_nc[:, 0]
    inter = per_nc[:, 1]
    p_sum = per_nc[:, 2]
    t_sum = per_nc[:, 3]

    bce_mean = jnp.sum(bce_sum) / (NC * HW)
    dice = 1.0 - (2.0 * inter + smooth) / (p_sum + t_sum + smooth)
    return bce_weight * bce_mean + dice_weight * jnp.mean(dice)


def _reference(inputs, targets, bce_weight=0.5, dice_weight=0.5, smooth=1.0):
    x = inputs.astype(jnp.float32)
    t = targets.astype(jnp.float32)
    bce = jnp.mean(jnp.maximum(x, 0.0) - x * t + jnp.log1p(jnp.exp(-jnp.abs(x))))
    p = jax.nn.sigmoid(x)
    inter = jnp.sum(p * t, axis=(2, 3))
    dice = 1.0 - (2.0 * inter + smooth) / (
        jnp.sum(p, axis=(2, 3)) + jnp.sum(t, axis=(2, 3)) + smooth)
    return bce_weight * bce + dice_weight * jnp.mean(dice)


if __name__ == "__main__":
    key = jax.random.PRNGKey(0)

    # Case 1: aligned shapes (mask-free path), f32 targets.
    k1, k2 = jax.random.split(key)
    N, C, H, W = 2, 4, 16, 16
    inputs = jax.random.normal(k1, (N, C, H, W), dtype=jnp.float32)             # logits
    targets = (jax.random.uniform(k2, (N, C, H, W)) > 0.5).astype(jnp.float32)   # binary masks

    loss = jax.block_until_ready(bce_plus_dice_loss(inputs, targets))
    ref = jax.block_until_ready(_reference(inputs, targets))
    assert jnp.allclose(loss, ref, atol=1e-5, rtol=1e-5), (loss, ref)

    # Case 2: ragged shapes (tail-masking path, no wrapper pad) + bf16 targets
    # (binary 0/1 is exact in bf16; exercises the narrow-dtype input stream).
    k3, k4 = jax.random.split(k2)
    N2, C2, H2, W2 = 2, 3, 10, 13
    inputs2 = jax.random.normal(k3, (N2, C2, H2, W2), dtype=jnp.float32)
    targets2 = (jax.random.uniform(k4, (N2, C2, H2, W2)) > 0.5).astype(jnp.bfloat16)

    loss2 = jax.block_until_ready(bce_plus_dice_loss(inputs2, targets2))
    ref2 = jax.block_until_ready(_reference(inputs2, targets2.astype(jnp.float32)))
    assert jnp.allclose(loss2, ref2, atol=1e-5, rtol=1e-5), (loss2, ref2)

    print("KERNEL_OK")
</pallas_src>

<mosaic_0001>
module attributes {stable_mosaic.version = 11 : i64} {
  func.func @_bce_dice_stats_kernel(%arg0: i32, %arg1: i32, %arg2: memref<32x128xf32, #tpu.memory_space<vmem>>, %arg3: memref<32x128xf32, #tpu.memory_space<vmem>>, %arg4: memref<32x512xf32, #tpu.memory_space<vmem>>, %arg5: memref<32x128xf32, #tpu.memory_space<vmem>>, %arg6: memref<32x128xf32, #tpu.memory_space<vmem>>, %arg7: memref<32x128xf32, #tpu.memory_space<vmem>>, %arg8: memref<32x128xf32, #tpu.memory_space<vmem>>) attributes {dimension_semantics = [#tpu.dimension_semantics<parallel>, #tpu.dimension_semantics<arbitrary>], iteration_bounds = array<i64: 1, 1>, scalar_prefetch = 0 : i64, scratch_operands = 4 : i64, tpu.core_type = #tpu.core_type<tc>, window_params = [{transform_indices = @transform_0, window_bounds = array<i64: 32, 128>}, {transform_indices = @transform_1, window_bounds = array<i64: 32, 128>}, {transform_indices = @transform_2, window_bounds = array<i64: 32, 512>}]} {
    %c0_i32 = arith.constant 0 : i32
    %0 = arith.cmpi eq, %arg1, %c0_i32 : i32
    %1 = arith.extui %0 : i1 to i32
    %c0_i32_0 = arith.constant 0 : i32
    %2 = arith.cmpi ne, %1, %c0_i32_0 : i32
    scf.if %2 {
      %cst_26 = arith.constant 0.000000e+00 : f32
      %38 = vector.broadcast %cst_26 : f32 to vector<32x128xf32>
      %c0_27 = arith.constant 0 : index
      %c0_28 = arith.constant 0 : index
      %39 = vector.load %arg5[%c0_27, %c0_28] : memref<32x128xf32, #tpu.memory_space<vmem>>, vector<32x128xf32>
      tpu.vector_store %arg5[%c0_27, %c0_28], %38 {strides = array<i32>} : memref<32x128xf32, #tpu.memory_space<vmem>>, vector<32x128xf32>,
      %cst_29 = arith.constant 0.000000e+00 : f32
      %40 = vector.broadcast %cst_29 : f32 to vector<32x128xf32>
      %c0_30 = arith.constant 0 : index
      %c0_31 = arith.constant 0 : index
      %41 = vector.load %arg6[%c0_30, %c0_31] : memref<32x128xf32, #tpu.memory_space<vmem>>, vector<32x128xf32>
      tpu.vector_store %arg6[%c0_30, %c0_31], %40 {strides = array<i32>} : memref<32x128xf32, #tpu.memory_space<vmem>>, vector<32x128xf32>,
      %cst_32 = arith.constant 0.000000e+00 : f32
      %42 = vector.broadcast %cst_32 : f32 to vector<32x128xf32>
      %c0_33 = arith.constant 0 : index
      %c0_34 = arith.constant 0 : index
      %43 = vector.load %arg7[%c0_33, %c0_34] : memref<32x128xf32, #tpu.memory_space<vmem>>, vector<32x128xf32>
      tpu.vector_store %arg7[%c0_33, %c0_34], %42 {strides = array<i32>} : memref<32x128xf32, #tpu.memory_space<vmem>>, vector<32x128xf32>,
      %cst_35 = arith.constant 0.000000e+00 : f32
      %44 = vector.broadcast %cst_35 : f32 to vector<32x128xf32>
      %c0_36 = arith.constant 0 : index
      %c0_37 = arith.constant 0 : index
      %45 = vector.load %arg8[%c0_36, %c0_37] : memref<32x128xf32, #tpu.memory_space<vmem>>, vector<32x128xf32>
      tpu.vector_store %arg8[%c0_36, %c0_37], %44 {strides = array<i32>} : memref<32x128xf32, #tpu.memory_space<vmem>>, vector<32x128xf32>,
    } else {
    }
    %c0 = arith.constant 0 : index
    %c0_1 = arith.constant 0 : index
    %3 = vector.load %arg2[%c0, %c0_1] : memref<32x128xf32, #tpu.memory_space<vmem>>, vector<32x128xf32>
    %c0_2 = arith.constant 0 : index
    %c0_3 = arith.constant 0 : index
    %4 = vector.load %arg3[%c0_2, %c0_3] : memref<32x128xf32, #tpu.memory_space<vmem>>, vector<32x128xf32>
    %5 = math.absf %3 : vector<32x128xf32>
    %cst = arith.constant 0.000000e+00 : f32
    %6 = vector.broadcast %cst : f32 to vector<32x128xf32>
    %7 = arith.subf %6, %5 : vector<32x128xf32>
    %8 = math.exp %7 : vector<32x128xf32>
    %cst_4 = arith.constant 0.000000e+00 : f32
    %9 = vector.broadcast %cst_4 : f32 to vector<32x128xf32>
    %10 = arith.maximumf %3, %9 : vector<32x128xf32>
    %11 = arith.mulf %3, %4 : vector<32x128xf32>
    %12 = arith.subf %10, %11 : vector<32x128xf32>
    %13 = math.log1p %8 : vector<32x128xf32>
    %14 = arith.addf %12, %13 : vector<32x128xf32>
    %cst_5 = arith.constant 0.000000e+00 : f32
    %15 = vector.broadcast %cst_5 : f32 to vector<32x128xf32>
    %16 = arith.cmpf oge, %3, %15 : vector<32x128xf32>
    %cst_6 = arith.constant 1.000000e+00 : f32
    %17 = vector.broadcast %cst_6 : f32 to vector<32x128xf32>
    %18 = arith.select %16, %17, %8 : vector<32x128xi1>, vector<32x128xf32>
    %cst_7 = arith.constant 1.000000e+00 : f32
    %19 = vector.broadcast %cst_7 : f32 to vector<32x128xf32>
    %20 = arith.addf %19, %8 : vector<32x128xf32>
    %21 = arith.divf %18, %20 : vector<32x128xf32>
    %c0_8 = arith.constant 0 : index
    %c0_9 = arith.constant 0 : index
    %22 = vector.load %arg5[%c0_8, %c0_9] : memref<32x128xf32, #tpu.memory_space<vmem>>, vector<32x128xf32>
    %23 = arith.addf %22, %14 : vector<32x128xf32>
    %c0_10 = arith.constant 0 : index
    %c0_11 = arith.constant 0 : index
    %24 = vector.load %arg5[%c0_10, %c0_11] : memref<32x128xf32, #tpu.memory_space<vmem>>, vector<32x128xf32>
    tpu.vector_store %arg5[%c0_10, %c0_11], %23 {strides = array<i32>} : memref<32x128xf32, #tpu.memory_space<vmem>>, vector<32x128xf32>,
    %c0_12 = arith.constant 0 : index
    %c0_13 = arith.constant 0 : index
    %25 = vector.load %arg6[%c0_12, %c0_13] : memref<32x128xf32, #tpu.memory_space<vmem>>, vector<32x128xf32>
    %26 = arith.mulf %21, %4 : vector<32x128xf32>
    %27 = arith.addf %25, %26 : vector<32x128xf32>
    %c0_14 = arith.constant 0 : index
    %c0_15 = arith.constant 0 : index
    %28 = vector.load %arg6[%c0_14, %c0_15] : memref<32x128xf32, #tpu.memory_space<vmem>>, vector<32x128xf32>
    tpu.vector_store %arg6[%c0_14, %c0_15], %27 {strides = array<i32>} : memref<32x128xf32, #tpu.memory_space<vmem>>, vector<32x128xf32>,
    %c0_16 = arith.constant 0 : index
    %c0_17 = arith.constant 0 : index
    %29 = vector.load %arg7[%c0_16, %c0_17] : memref<32x128xf32, #tpu.memory_space<vmem>>, vector<32x128xf32>
    %30 = arith.addf %29, %21 : vector<32x128xf32>
    %c0_18 = arith.constant 0 : index
    %c0_19 = arith.constant 0 : index
    %31 = vector.load %arg7[%c0_18, %c0_19] : memref<32x128xf32, #tpu.memory_space<vmem>>, vector<32x128xf32>
    tpu.vector_store %arg7[%c0_18, %c0_19], %30 {strides = array<i32>} : memref<32x128xf32, #tpu.memory_space<vmem>>, vector<32x128xf32>,
    %c0_20 = arith.constant 0 : index
    %c0_21 = arith.constant 0 : index
    %32 = vector.load %arg8[%c0_20, %c0_21] : memref<32x128xf32, #tpu.memory_space<vmem>>, vector<32x128xf32>
    %33 = arith.addf %32, %4 : vector<32x128xf32>
    %c0_22 = arith.constant 0 : index
    %c0_23 = arith.constant 0 : index
    %34 = vector.load %arg8[%c0_22, %c0_23] : memref<32x128xf32, #tpu.memory_space<vmem>>, vector<32x128xf32>
    tpu.vector_store %arg8[%c0_22, %c0_23], %33 {strides = array<i32>} : memref<32x128xf32, #tpu.memory_space<vmem>>, vector<32x128xf32>,
    %c0_i32_24 = arith.constant 0 : i32
    %35 = arith.cmpi eq, %arg1, %c0_i32_24 : i32
    %36 = arith.extui %35 : i1 to i32
    %c0_i32_25 = arith.constant 0 : i32
    %37 = arith.cmpi ne, %36, %c0_i32_25 : i32
    scf.if %37 {
      %c0_26 = arith.constant 0 : index
      %c0_27 = arith.constant 0 : index
      %38 = vector.load %arg5[%c0_26, %c0_27] : memref<32x128xf32, #tpu.memory_space<vmem>>, vector<32x128xf32>
      %c0_28 = arith.constant 0 : index
      %c0_29 = arith.constant 0 : index
      %39 = vector.load %arg4[%c0_28, %c0_29] : memref<32x512xf32, #tpu.memory_space<vmem>>, vector<32x128xf32>
      tpu.vector_store %arg4[%c0_28, %c0_29], %38 {strides = array<i32>} : memref<32x512xf32, #tpu.memory_space<vmem>>, vector<32x128xf32>,
      %c0_30 = arith.constant 0 : index
      %c0_31 = arith.constant 0 : index
      %40 = vector.load %arg6[%c0_30, %c0_31] : memref<32x128xf32, #tpu.memory_space<vmem>>, vector<32x128xf32>
      %c0_32 = arith.constant 0 : index
      %c128 = arith.constant 128 : index
      %41 = vector.load %arg4[%c0_32, %c128] : memref<32x512xf32, #tpu.memory_space<vmem>>, vector<32x128xf32>
      tpu.vector_store %arg4[%c0_32, %c128], %40 {strides = array<i32>} : memref<32x512xf32, #tpu.memory_space<vmem>>, vector<32x128xf32>,
      %c0_33 = arith.constant 0 : index
      %c0_34 = arith.constant 0 : index
      %42 = vector.load %arg7[%c0_33, %c0_34] : memref<32x128xf32, #tpu.memory_space<vmem>>, vector<32x128xf32>
      %c0_35 = arith.constant 0 : index
      %c256 = arith.constant 256 : index
      %43 = vector.load %arg4[%c0_35, %c256] : memref<32x512xf32, #tpu.memory_space<vmem>>, vector<32x128xf32>
      tpu.vector_store %arg4[%c0_35, %c256], %42 {strides = array<i32>} : memref<32x512xf32, #tpu.memory_space<vmem>>, vector<32x128xf32>,
      %c0_36 = arith.constant 0 : index
      %c0_37 = arith.constant 0 : index
      %44 = vector.load %arg8[%c0_36, %c0_37] : memref<32x128xf32, #tpu.memory_space<vmem>>, vector<32x128xf32>
      %c0_38 = arith.constant 0 : index
      %c384 = arith.constant 384 : index
      %45 = vector.load %arg4[%c0_38, %c384] : memref<32x512xf32, #tpu.memory_space<vmem>>, vector<32x128xf32>
      tpu.vector_store %arg4[%c0_38, %c384], %44 {strides = array<i32>} : memref<32x512xf32, #tpu.memory_space<vmem>>, vector<32x128xf32>,
    } else {
    }
    return
  }
  func.func @transform_0(%arg0: i32, %arg1: i32) -> (i32, i32) {
    %c0_i32 = arith.constant 0 : i32
    return %arg0, %arg1 : i32, i32
  }
  func.func @transform_1(%arg0: i32, %arg1: i32) -> (i32, i32) {
    %c0_i32 = arith.constant 0 : i32
    return %arg0, %arg1 : i32, i32
  }
  func.func @transform_2(%arg0: i32, %arg1: i32) -> (i32, i32) {
    %c0_i32 = arith.constant 0 : i32
    %c0_i32_0 = arith.constant 0 : i32
    return %arg0, %c0_i32 : i32, i32
  }
}

</mosaic_0001>

<llo_original>
// kernel: tpu_custom_call.1
$region0: #{tpu_custom_call.1}
  #allocation0 [shape = 'u32[]', space=smem, size = 0x4, offset = 0x4, fixed_abs, tag = 'smem constant byte address 0x4 - core index']
  #allocation1 [shape = 'u32[144,128]{1,0:T(1,128)}', space=vmem, size = 0x12000, scoped, tag = 'internal scratch']
  #allocation2 [shape = 'f32[32,128]{1,0:T(8,128)}', space=vmem, size = 0x4000, scoped, tag = 'scratch operand']
  #allocation3 [shape = 'f32[32,128]{1,0:T(8,128)}', space=vmem, size = 0x4000, scoped, tag = 'scratch operand']
  #allocation4 [shape = 'f32[32,128]{1,0:T(8,128)}', space=vmem, size = 0x4000, scoped, tag = 'scratch operand']
  #allocation5 [shape = 'f32[32,128]{1,0:T(8,128)}', space=vmem, size = 0x4000, scoped, tag = 'scratch operand']
  %s0 = inlined_call_operand.hbm [shape: f32[16,128], index: 0, kind: input, shape index: {}]
  %s1 = inlined_call_operand.hbm [shape: f32[16,128], index: 1, kind: input, shape index: {}]
  %s2 = inlined_call_operand.hbm [shape: f32[16,512], index: 2, kind: output, shape index: {}]
  %s3 = sld [smem:[#allocation0]]
  $region34: #{tpu_custom_call.1} parent=0
    _
  %s5 = ssub.s32 1, %s3
  %s6 = scalar_select 0, %s5, %s3
  $region1: #{tpu_custom_call.1} parent=0
    #allocation6 [shape = 'u8[16384]{0}', space=vmem, size = 0x4000, scoped, tag = 'input window, operand 0, single buffered']
    #allocation7 [shape = 's32[1]{0}', space=sflag, size = 0x4, scoped, tag = 'scoped memory for tpu_custom_call.1']
    #allocation8 [shape = 's32[1]{0}', space=sflag, size = 0x4, scoped, tag = 'scoped memory for tpu_custom_call.1']
    #allocation9 [shape = 'u8[16384]{0}', space=vmem, size = 0x4000, scoped, tag = 'input window, operand 1, single buffered']
    #allocation10 [shape = 's32[1]{0}', space=sflag, size = 0x4, scoped, tag = 'scoped memory for tpu_custom_call.1']
    #allocation11 [shape = 'u8[65536]{0}', space=vmem, size = 0x10000, scoped, tag = 'output window, operand 0, single buffered']
    %7 = vsyncpa [#allocation7], 0
    %8 = vsyncpa [#allocation10], 0
    %9 = vsyncpa [#allocation8], 0
    // Predicated region
    $region2: #{tpu_custom_call.1} parent=1 // pred_check
      _
    $region3: #{tpu_custom_call.1} parent=1 // pred_check_branch
      %11 = sbr.rel (0) target = $region5
    $region4: #{tpu_custom_call.1} parent=1 // pred_region
      %s13 = ssub.s32 512, 256
      %14 = vsyncadd [#allocation7], %s13
      %s15 = sshll.u32 [#allocation6], 4
      %s16 = int_to_ptr.vmem [resolvable:$true] %s15
      %21 = dma.hbm_to_vmem [thread:$0]  %s0, 256, %s16, [#allocation7], 128, 128, 8
    $region5: #{tpu_custom_call.1} parent=1 // pred_fallthru
      _
    // Predicated region
    $region6: #{tpu_custom_call.1} parent=1 // pred_check
      _
    $region7: #{tpu_custom_call.1} parent=1 // pred_check_branch
      %23 = sbr.rel (0) target = $region9
    $region8: #{tpu_custom_call.1} parent=1 // pred_region
      %s25 = ssub.s32 512, 256
      %26 = vsyncadd [#allocation10], %s25
      %s27 = sshll.u32 [#allocation9], 4
      %s28 = int_to_ptr.vmem [resolvable:$true] %s27
      %33 = dma.hbm_to_vmem [thread:$0]  %s1, 256, %s28, [#allocation10], 128, 128, 8
    $region9: #{tpu_custom_call.1} parent=1 // pred_fallthru
      _
    // Predicated region
    $region10: #{tpu_custom_call.1} parent=1 // pred_check
      _
    $region11: #{tpu_custom_call.1} parent=1 // pred_check_branch
      %35 = sbr.rel (0) target = $region13
    $region12: #{tpu_custom_call.1} parent=1 // pred_region
      %36 = dma.done [#allocation7], 512
    $region13: #{tpu_custom_call.1} parent=1 // pred_fallthru
      _
    // Predicated region
    $region14: #{tpu_custom_call.1} parent=1 // pred_check
      _
    $region15: #{tpu_custom_call.1} parent=1 // pred_check_branch
      %38 = sbr.rel (0) target = $region17
    $region16: #{tpu_custom_call.1} parent=1 // pred_region
      %39 = dma.done [#allocation10], 512
    $region17: #{tpu_custom_call.1} parent=1 // pred_fallthru
      _
    %p40 = scmp.eq.s32.totalorder 0, 0
    // Predicated region
    $region18: #{tpu_custom_call.1} parent=1 // pred_check
      %p41 = pneg %p40
    $region19: #{tpu_custom_call.1} parent=1 // pred_check_branch
      %43 = sbr.rel (%p41) target = $region21
    $region20: #{tpu_custom_call.1} parent=1 // pred_region
      %44 = vst [vmem:[#allocation2] sm:$0xff] 0.0
      %45 = vst [vmem:[#allocation2 + $0x8] sm:$0xff] 0.0
      %46 = vst [vmem:[#allocation2 + $0x10] sm:$0xff] 0.0
      %47 = vst [vmem:[#allocation2 + $0x18] sm:$0xff] 0.0
      %48 = vst [vmem:[#allocation3] sm:$0xff] 0.0
      %49 = vst [vmem:[#allocation3 + $0x8] sm:$0xff] 0.0
      %50 = vst [vmem:[#allocation3 + $0x10] sm:$0xff] 0.0
      %51 = vst [vmem:[#allocation3 + $0x18] sm:$0xff] 0.0
      %52 = vst [vmem:[#allocation4] sm:$0xff] 0.0
      %53 = vst [vmem:[#allocation4 + $0x8] sm:$0xff] 0.0
      %54 = vst [vmem:[#allocation4 + $0x10] sm:$0xff] 0.0
      %55 = vst [vmem:[#allocation4 + $0x18] sm:$0xff] 0.0
      %56 = vst [vmem:[#allocation5] sm:$0xff] 0.0
      %57 = vst [vmem:[#allocation5 + $0x8] sm:$0xff] 0.0
      %58 = vst [vmem:[#allocation5 + $0x10] sm:$0xff] 0.0
      %59 = vst [vmem:[#allocation5 + $0x18] sm:$0xff] 0.0
    $region21: #{tpu_custom_call.1} parent=1 // pred_fallthru
      _
    %v60 = vld [vmem:[#allocation6] sm:$0xff]
    %v61 = vld [vmem:[#allocation6 + $0x8] sm:$0xff]
    %v62 = vld [vmem:[#allocation6 + $0x10] sm:$0xff]
    %v63 = vld [vmem:[#allocation6 + $0x18] sm:$0xff]
    %v64 = vld [vmem:[#allocation9] sm:$0xff]
    %v65 = vld [vmem:[#allocation9 + $0x8] sm:$0xff]
    %v66 = vld [vmem:[#allocation9 + $0x10] sm:$0xff]
    %v67 = vld [vmem:[#allocation9 + $0x18] sm:$0xff]
    %v68 = vand.u32 2147483647, %v60
    %v69 = vand.u32 2147483647, %v61
    %v70 = vand.u32 2147483647, %v62
    %v71 = vand.u32 2147483647, %v63
    %v72 = vsub.f32 0.0, %v68
    %v73 = vsub.f32 0.0, %v69
    %v74 = vsub.f32 0.0, %v70
    %v75 = vsub.f32 0.0, %v71
    %v76 = vmul.f32 %v72, 1.442695
    %v77 = vpow.pop %v76
    %v78 = vmul.f32 %v73, 1.442695
    %v79 = vpow.pop %v78
    %v80 = vmul.f32 %v74, 1.442695
    %v81 = vpow.pop %v80
    %v82 = vmul.f32 %v75, 1.442695
    %v83 = vpow.pop %v82
    %v84 = vmax.f32 %v60, 0.0
    %v85 = vmax.f32 %v61, 0.0
    %v86 = vmax.f32 %v62, 0.0
    %v87 = vmax.f32 %v63, 0.0
    %v88 = vmul.f32 %v60, %v64
    %v89 = vmul.f32 %v61, %v65
    %v90 = vmul.f32 %v62, %v66
    %v91 = vmul.f32 %v63, %v67
    %v92 = vsub.f32 %v84, %v88
    %v93 = vsub.f32 %v85, %v89
    %v94 = vsub.f32 %v86, %v90
    %v95 = vsub.f32 %v87, %v91
    %v96 = vadd.f32 %v77, 1.0
    %v97 = vlog2.pop %v96
    %v98 = vmul.f32 %v97, 0.6931472
    %v99 = vmul.f32 -0.5, %v77
    %v100 = vadd.f32 %v99, 1.0
    %v101 = vmul.f32 %v100, %v77
    %v102 = vand.u32 2147483647, %v77
    %vm103 = vcmp.lt.f32.partialorder %v102, 0.0004427343
    %v104 = vsel %vm103, %v101, %v98
    %v105 = vadd.f32 %v79, 1.0
    %v106 = vlog2.pop %v105
    %v107 = vmul.f32 %v106, 0.6931472
    %v108 = vmul.f32 -0.5, %v79
    %v109 = vadd.f32 %v108, 1.0
    %v110 = vmul.f32 %v109, %v79
    %v111 = vand.u32 2147483647, %v79
    %vm112 = vcmp.lt.f32.partialorder %v111, 0.0004427343
    %v113 = vsel %vm112, %v110, %v107
    %v114 = vadd.f32 %v81, 1.0
    %v115 = vlog2.pop %v114
    %v116 = vmul.f32 %v115, 0.6931472
    %v117 = vmul.f32 -0.5, %v81
    %v118 = vadd.f32 %v117, 1.0
    %v119 = vmul.f32 %v118, %v81
    %v120 = vand.u32 2147483647, %v81
    %vm121 = vcmp.lt.f32.partialorder %v120, 0.0004427343
    %v122 = vsel %vm121, %v119, %v116
    %v123 = vadd.f32 %v83, 1.0
    %v124 = vlog2.pop %v123
    %v125 = vmul.f32 %v124, 0.6931472
    %v126 = vmul.f32 -0.5, %v83
    %v127 = vadd.f32 %v126, 1.0
    %v128 = vmul.f32 %v127, %v83
    %v129 = vand.u32 2147483647, %v83
    %vm130 = vcmp.lt.f32.partialorder %v129, 0.0004427343
    %v131 = vsel %vm130, %v128, %v125
    %v132 = vadd.f32 %v92, %v104
    %v133 = vadd.f32 %v93, %v113
    %v134 = vadd.f32 %v94, %v122
    %v135 = vadd.f32 %v95, %v131
    %vm136 = vcmp.ge.f32.partialorder %v60, 0.0
    %vm137 = vcmp.ge.f32.partialorder %v61, 0.0
    %vm138 = vcmp.ge.f32.partialorder %v62, 0.0
    %vm139 = vcmp.ge.f32.partialorder %v63, 0.0
    %v140 = vsel %vm136, 1.0, %v77
    %v141 = vsel %vm137, 1.0, %v79
    %v142 = vsel %vm138, 1.0, %v81
    %v143 = vsel %vm139, 1.0, %v83
    %v144 = vadd.f32 %v77, 1.0
    %v145 = vadd.f32 %v79, 1.0
    %v146 = vadd.f32 %v81, 1.0
    %v147 = vadd.f32 %v83, 1.0
    %v148 = vrcp.pop %v144
    %v149 = vmul.f32 %v140, %v148
    %v150 = vrcp.pop %v145
    %v151 = vmul.f32 %v141, %v150
    %v152 = vrcp.pop %v146
    %v153 = vmul.f32 %v142, %v152
    %v154 = vrcp.pop %v147
    %v155 = vmul.f32 %v143, %v154
    %v156 = vld [vmem:[#allocation2] sm:$0xff]
    %v157 = vld [vmem:[#allocation2 + $0x8] sm:$0xff]
    %v158 = vld [vmem:[#allocation2 + $0x10] sm:$0xff]
    %v159 = vld [vmem:[#allocation2 + $0x18] sm:$0xff]
    %v160 = vadd.f32 %v156, %v132
    %v161 = vadd.f32 %v157, %v133
    %v162 = vadd.f32 %v158, %v134
    %v163 = vadd.f32 %v159, %v135
    %164 = vst [vmem:[#allocation2] sm:$0xff] %v160
    %165 = vst [vmem:[#allocation2 + $0x8] sm:$0xff] %v161
    %166 = vst [vmem:[#allocation2 + $0x10] sm:$0xff] %v162
    %167 = vst [vmem:[#allocation2 + $0x18] sm:$0xff] %v163
    %v168 = vld [vmem:[#allocation3] sm:$0xff]
    %v169 = vld [vmem:[#allocation3 + $0x8] sm:$0xff]
    %v170 = vld [vmem:[#allocation3 + $0x10] sm:$0xff]
    %v171 = vld [vmem:[#allocation3 + $0x18] sm:$0xff]
    %v172 = vmul.f32 %v149, %v64
    %v173 = vmul.f32 %v151, %v65
    %v174 = vmul.f32 %v153, %v66
    %v175 = vmul.f32 %v155, %v67
    %v176 = vadd.f32 %v168, %v172
    %v177 = vadd.f32 %v169, %v173
    %v178 = vadd.f32 %v170, %v174
    %v179 = vadd.f32 %v171, %v175
    %180 = vst [vmem:[#allocation3] sm:$0xff] %v176
    %181 = vst [vmem:[#allocation3 + $0x8] sm:$0xff] %v177
    %182 = vst [vmem:[#allocation3 + $0x10] sm:$0xff] %v178
    %183 = vst [vmem:[#allocation3 + $0x18] sm:$0xff] %v179
    %v184 = vld [vmem:[#allocation4] sm:$0xff]
    %v185 = vld [vmem:[#allocation4 + $0x8] sm:$0xff]
    %v186 = vld [vmem:[#allocation4 + $0x10] sm:$0xff]
    %v187 = vld [vmem:[#allocation4 + $0x18] sm:$0xff]
    %v188 = vadd.f32 %v184, %v149
    %v189 = vadd.f32 %v185, %v151
    %v190 = vadd.f32 %v186, %v153
    %v191 = vadd.f32 %v187, %v155
    %192 = vst [vmem:[#allocation4] sm:$0xff] %v188
    %193 = vst [vmem:[#allocation4 + $0x8] sm:$0xff] %v189
    %194 = vst [vmem:[#allocation4 + $0x10] sm:$0xff] %v190
    %195 = vst [vmem:[#allocation4 + $0x18] sm:$0xff] %v191
    %v196 = vld [vmem:[#allocation5] sm:$0xff]
    %v197 = vld [vmem:[#allocation5 + $0x8] sm:$0xff]
    %v198 = vld [vmem:[#allocation5 + $0x10] sm:$0xff]
    %v199 = vld [vmem:[#allocation5 + $0x18] sm:$0xff]
    %v200 = vadd.f32 %v196, %v64
    %v201 = vadd.f32 %v197, %v65
    %v202 = vadd.f32 %v198, %v66
    %v203 = vadd.f32 %v199, %v67
    %204 = vst [vmem:[#allocation5] sm:$0xff] %v200
    %205 = vst [vmem:[#allocation5 + $0x8] sm:$0xff] %v201
    %206 = vst [vmem:[#allocation5 + $0x10] sm:$0xff] %v202
    %207 = vst [vmem:[#allocation5 + $0x18] sm:$0xff] %v203
    // Predicated region
    $region22: #{tpu_custom_call.1} parent=1 // pred_check
      %p208 = pneg %p40
    $region23: #{tpu_custom_call.1} parent=1 // pred_check_branch
      %210 = sbr.rel (%p208) target = $region25
    $region24: #{tpu_custom_call.1} parent=1 // pred_region
      %v211 = vld [vmem:[#allocation2] sm:$0xff]
      %v212 = vld [vmem:[#allocation2 + $0x8] sm:$0xff]
      %v213 = vld [vmem:[#allocation2 + $0x10] sm:$0xff]
      %v214 = vld [vmem:[#allocation2 + $0x18] sm:$0xff]
      %215 = vst [vmem:[#allocation11] sm:$0xff] %v211
      %216 = vst [vmem:[#allocation11 + $0x20] sm:$0xff] %v212
      %217 = vst [vmem:[#allocation11 + $0x40] sm:$0xff] %v213
      %218 = vst [vmem:[#allocation11 + $0x60] sm:$0xff] %v214
      %v219 = vld [vmem:[#allocation3] sm:$0xff]
      %v220 = vld [vmem:[#allocation3 + $0x8] sm:$0xff]
      %v221 = vld [vmem:[#allocation3 + $0x10] sm:$0xff]
      %v222 = vld [vmem:[#allocation3 + $0x18] sm:$0xff]
      %223 = vst [vmem:[#allocation11 + $0x8] sm:$0xff] %v219
      %224 = vst [vmem:[#allocation11 + $0x28] sm:$0xff] %v220
      %225 = vst [vmem:[#allocation11 + $0x48] sm:$0xff] %v221
      %226 = vst [vmem:[#allocation11 + $0x68] sm:$0xff] %v222
      %v227 = vld [vmem:[#allocation4] sm:$0xff]
      %v228 = vld [vmem:[#allocation4 + $0x8] sm:$0xff]
      %v229 = vld [vmem:[#allocation4 + $0x10] sm:$0xff]
      %v230 = vld [vmem:[#allocation4 + $0x18] sm:$0xff]
      %231 = vst [vmem:[#allocation11 + $0x10] sm:$0xff] %v227
      %232 = vst [vmem:[#allocation11 + $0x30] sm:$0xff] %v228
      %233 = vst [vmem:[#allocation11 + $0x50] sm:$0xff] %v229
      %234 = vst [vmem:[#allocation11 + $0x70] sm:$0xff] %v230
      %v235 = vld [vmem:[#allocation5] sm:$0xff]
      %v236 = vld [vmem:[#allocation5 + $0x8] sm:$0xff]
      %v237 = vld [vmem:[#allocation5 + $0x10] sm:$0xff]
      %v238 = vld [vmem:[#allocation5 + $0x18] sm:$0xff]
      %239 = vst [vmem:[#allocation11 + $0x18] sm:$0xff] %v235
      %240 = vst [vmem:[#allocation11 + $0x38] sm:$0xff] %v236
      %241 = vst [vmem:[#allocation11 + $0x58] sm:$0xff] %v237
      %242 = vst [vmem:[#allocation11 + $0x78] sm:$0xff] %v238
    $region25: #{tpu_custom_call.1} parent=1 // pred_fallthru
      _
    // Predicated region
    $region26: #{tpu_custom_call.1} parent=1 // pred_check
      _
    $region27: #{tpu_custom_call.1} parent=1 // pred_check_branch
      %244 = sbr.rel (0) target = $region29
    $region28: #{tpu_custom_call.1} parent=1 // pred_region
      %s246 = ssub.s32 2048, 1024
      %247 = vsyncadd [#allocation8], %s246
      %s248 = sshll.u32 [#allocation11], 4
      %s249 = int_to_ptr.vmem [resolvable:$true] %s248
      %254 = dma.vmem_to_hbm [thread:$0]  %s249, 1024, %s2, [#allocation8], 512, 512, 32
    $region29: #{tpu_custom_call.1} parent=1 // pred_fallthru
      _
    // Predicated region
    $region30: #{tpu_custom_call.1} parent=1 // pred_check
      _
    $region31: #{tpu_custom_call.1} parent=1 // pred_check_branch
      %256 = sbr.rel (0) target = $region33
    $region32: #{tpu_custom_call.1} parent=1 // pred_region
      %257 = dma.done [#allocation8], 2048
    $region33: #{tpu_custom_call.1} parent=1 // pred_fallthru
      _
    %258 = vsyncpa [#allocation7], 1
    %259 = vsyncpa [#allocation10], 1
    %260 = vsyncpa [#allocation8], 1

</llo_original>
